<compile_context>
chip_gen: v7x
topology: tpu7x:2x2x1
jax: 0.10.0
libtpu: 0.0.40
codegen_flags: <defaults>
</compile_context>

<pallas_src>
import jax
import jax.numpy as jnp
from jax.experimental import pallas as pl
from jax.experimental.pallas import tpu as pltpu


def _make_kernel(H, W, D):
    WD = W * D

    def kernel(imgT_ref, grid_ref, gsel_ref, out_ref):
        # imgT_ref: (1, W*D, H) f32   image with H as the contraction (row) axis
        # grid_ref: (1, 2, TP)  f32   row 0 = y, row 1 = x, lane-dense over pixels
        # gsel_ref: (D, W*D)    f32   constant channel-selection matrix
        # out_ref : (1, D, TP)  f32   transposed output (lane-dense over pixels)
        imgT = imgT_ref[0]                      # (W*D, H)
        g = grid_ref[0]                         # (2, TP)
        TP = g.shape[1]

        yf = g[0:1, :]                          # (1, TP)  y in [-1, 1]
        xf = g[1:2, :]                          # (1, TP)  x in [-1, 1]

        # Continuous source coordinates.
        xc = (xf + 1.0) * ((W - 1) * 0.5)
        yc = (yf + 1.0) * ((H - 1) * 0.5)
        x0f = jnp.floor(xc)
        y0f = jnp.floor(yc)
        wx0 = 1.0 - (xc - x0f)                  # weight of left column x0
        wy0 = 1.0 - (yc - y0f)                  # weight of top row y0
        wx1 = 1.0 - wx0                         # weight of right column x0 + 1
        wy1 = 1.0 - wy0                         # weight of bottom row y0 + 1
        x0 = x0f.astype(jnp.int32)              # (1, TP)
        y0 = y0f.astype(jnp.int32)              # (1, TP)

        # Row one-hot weights WyT[h, p]: wy0 at h == y0, wy1 at h == y0 + 1.
        # Out-of-bounds rows never match the iota, so OOB corners naturally get
        # zero weight (identical to the reference's bounds masking).
        hiota = jax.lax.broadcasted_iota(jnp.int32, (H, TP), 0)
        wyT = (jnp.where(hiota == y0, wy0, 0.0)
               + jnp.where(hiota == y0 + 1, wy1, 0.0))                # (H, TP)

        # Expanded column weights WxET[w*D + d, p] = Wx[p, w], built with range
        # compares (no integer div).  OOB columns fall outside [0, W*D) -> zero.
        kiota = jax.lax.broadcasted_iota(jnp.int32, (WD, TP), 0)
        x0d = x0 * D
        wxT = (jnp.where((kiota >= x0d) & (kiota < x0d + D), wx0, 0.0)
               + jnp.where((kiota >= x0d + D) & (kiota < x0d + 2 * D), wx1, 0.0))

        # Stage 1 (MXU): contract over image rows h.  N = TP (lane-dense).
        s = jnp.dot(imgT, wyT, preferred_element_type=jnp.float32)    # (W*D, TP)

        # Stage 2: apply column weights (VPU), reduce over w per channel (MXU).
        out_ref[0] = jnp.dot(gsel_ref[...], wxT * s,
                             preferred_element_type=jnp.float32)      # (D, TP)

    return kernel


def _pick_tile(P):
    """Largest pixel tile that keeps lane-dense (multiple-of-128) blocks, else whole P."""
    for cand in (1024, 512, 256, 128):
        if P >= cand and P % cand == 0:
            return cand
    return P


@jax.jit
def grid_sampler(images_bhwd, grids):
    """Bilinear grid sampler. images_bhwd: (B,H,W,D); grids: (B,Ho,Wo,2), (y,x) in [-1,1]."""
    B, H, W, D = images_bhwd.shape
    _, Ho, Wo, _ = grids.shape
    P = Ho * Wo
    WD = W * D
    TP = _pick_tile(P)
    n_p = P // TP

    # Wrapper-side layout plumbing (done once by XLA in HBM):
    #   image  -> (B, W*D, H): H becomes the matmul contraction dim.
    #   grids  -> (B, 2, P)  : y/x coordinates lane-dense over output pixels.
    imgT = images_bhwd.astype(jnp.float32).reshape(B, H, WD).transpose(0, 2, 1)
    coords = grids.astype(jnp.float32).reshape(B, P, 2).transpose(0, 2, 1)
    # Constant channel-selection matrix: gsel[d, w*D + d'] = (d == d').
    gsel = jnp.tile(jnp.eye(D, dtype=jnp.float32), (1, W))             # (D, W*D)

    flops = 2 * B * P * WD * (H + D)
    bytes_accessed = 4 * (B * H * W * D + 2 * B * P + D * WD + B * P * D)

    out_t = pl.pallas_call(
        _make_kernel(H, W, D),
        out_shape=jax.ShapeDtypeStruct((B, D, P), jnp.float32),
        grid_spec=pltpu.PrefetchScalarGridSpec(
            num_scalar_prefetch=0,
            grid=(B, n_p),
            in_specs=[
                # Image block index is constant along the pixel-tile axis, so the
                # image stays VMEM-resident instead of being re-DMA'd per tile.
                pl.BlockSpec((1, WD, H), lambda b, p: (b, 0, 0)),
                pl.BlockSpec((1, 2, TP), lambda b, p: (b, 0, p)),
                pl.BlockSpec((D, WD), lambda b, p: (0, 0)),
            ],
            out_specs=pl.BlockSpec((1, D, TP), lambda b, p: (b, 0, p)),
        ),
        compiler_params=pltpu.CompilerParams(
            dimension_semantics=("parallel", "parallel"),
            vmem_limit_bytes=48 * 1024 * 1024,
        ),
        cost_estimate=pl.CostEstimate(
            flops=flops, transcendentals=0, bytes_accessed=bytes_accessed),
    )(imgT, coords, gsel)

    # (B, D, P) -> (B, Ho, Wo, D)
    return out_t.transpose(0, 2, 1).reshape(B, Ho, Wo, D)


def _reference(images_bhwd, grids):
    """Plain-JAX reference of BilinearSamplerBHWD_updateOutput."""
    B, H, W, D = images_bhwd.shape
    _, Ho, Wo, _ = grids.shape
    yf = grids[..., 0]
    xf = grids[..., 1]
    xc = (xf + 1.0) * (W - 1) / 2.0
    yc = (yf + 1.0) * (H - 1) / 2.0
    x0 = jnp.floor(xc).astype(jnp.int32)
    y0 = jnp.floor(yc).astype(jnp.int32)
    wx = 1.0 - (xc - x0)
    wy = 1.0 - (yc - y0)

    def corner(yi, xi, w):
        inb = (xi >= 0) & (xi <= W - 1) & (yi >= 0) & (yi <= H - 1)
        yi_c = jnp.clip(yi, 0, H - 1)
        xi_c = jnp.clip(xi, 0, W - 1)
        b_idx = jnp.arange(B)[:, None, None]
        vals = images_bhwd[b_idx, yi_c, xi_c]          # (B, Ho, Wo, D)
        w = jnp.where(inb, w, 0.0)
        return vals * w[..., None]

    out = (corner(y0, x0, wy * wx)
           + corner(y0, x0 + 1, wy * (1.0 - wx))
           + corner(y0 + 1, x0, (1.0 - wy) * wx)
           + corner(y0 + 1, x0 + 1, (1.0 - wy) * (1.0 - wx)))
    return out


if __name__ == "__main__":
    key = jax.random.PRNGKey(0)
    k_img, k_grid = jax.random.split(key)

    B, H, W, D = 2, 16, 16, 4
    Ho, Wo = 8, 8

    images = jax.random.normal(k_img, (B, H, W, D), dtype=jnp.float32)
    # grids in [-1, 1], slightly outside bounds in places to exercise the
    # zero-padding path
    grids = jax.random.uniform(
        k_grid, (B, Ho, Wo, 2), dtype=jnp.float32, minval=-1.1, maxval=1.1
    )

    out = grid_sampler(images, grids)
    out = jax.block_until_ready(out)

    ref = _reference(images, grids)
    if not jnp.allclose(out, ref, atol=1e-5, rtol=1e-5):
        raise AssertionError("Pallas grid sampler does not match reference")

    print("KERNEL_OK")
</pallas_src>

<mosaic_0001>
module attributes {stable_mosaic.version = 11 : i64} {
  func.func @kernel(%arg0: i32, %arg1: i32, %arg2: memref<1x64x16xf32, #tpu.memory_space<vmem>>, %arg3: memref<1x2x64xf32, #tpu.memory_space<vmem>>, %arg4: memref<4x64xf32, #tpu.memory_space<vmem>>, %arg5: memref<1x4x64xf32, #tpu.memory_space<vmem>>) attributes {dimension_semantics = [#tpu.dimension_semantics<parallel>, #tpu.dimension_semantics<parallel>], iteration_bounds = array<i64: 2, 1>, scalar_prefetch = 0 : i64, scratch_operands = 0 : i64, tpu.core_type = #tpu.core_type<tc>, window_params = [{transform_indices = @transform_0, window_bounds = array<i64: 1, 64, 16>}, {transform_indices = @transform_1, window_bounds = array<i64: 1, 2, 64>}, {pipeline_mode = #tpu.pipeline_mode<synchronous>, transform_indices = @transform_2, window_bounds = array<i64: 4, 64>}, {transform_indices = @transform_3, window_bounds = array<i64: 1, 4, 64>}]} {
    %c0 = arith.constant 0 : index
    %c0_0 = arith.constant 0 : index
    %c0_1 = arith.constant 0 : index
    %0 = vector.load %arg2[%c0, %c0_0, %c0_1] : memref<1x64x16xf32, #tpu.memory_space<vmem>>, vector<1x64x16xf32>
    %1 = vector.shape_cast %0 : vector<1x64x16xf32> to vector<64x16xf32>
    %c0_2 = arith.constant 0 : index
    %c0_3 = arith.constant 0 : index
    %c0_4 = arith.constant 0 : index
    %2 = vector.load %arg3[%c0_2, %c0_3, %c0_4] : memref<1x2x64xf32, #tpu.memory_space<vmem>>, vector<1x2x64xf32>
    %3 = vector.shape_cast %2 : vector<1x2x64xf32> to vector<2x64xf32>
    %4 = vector.extract_strided_slice %3 {offsets = [0, 0], sizes = [1, 64], strides = [1, 1]} : vector<2x64xf32> to vector<1x64xf32>
    %5 = vector.extract_strided_slice %3 {offsets = [1, 0], sizes = [1, 64], strides = [1, 1]} : vector<2x64xf32> to vector<1x64xf32>
    %cst = arith.constant 1.000000e+00 : f32
    %6 = vector.broadcast %cst : f32 to vector<1x64xf32>
    %7 = arith.addf %5, %6 : vector<1x64xf32>
    %cst_5 = arith.constant 7.500000e+00 : f32
    %8 = vector.broadcast %cst_5 : f32 to vector<1x64xf32>
    %9 = arith.mulf %7, %8 : vector<1x64xf32>
    %cst_6 = arith.constant 1.000000e+00 : f32
    %10 = vector.broadcast %cst_6 : f32 to vector<1x64xf32>
    %11 = arith.addf %4, %10 : vector<1x64xf32>
    %cst_7 = arith.constant 7.500000e+00 : f32
    %12 = vector.broadcast %cst_7 : f32 to vector<1x64xf32>
    %13 = arith.mulf %11, %12 : vector<1x64xf32>
    %14 = math.floor %9 : vector<1x64xf32>
    %15 = math.floor %13 : vector<1x64xf32>
    %16 = arith.subf %9, %14 : vector<1x64xf32>
    %cst_8 = arith.constant 1.000000e+00 : f32
    %17 = vector.broadcast %cst_8 : f32 to vector<1x64xf32>
    %18 = arith.subf %17, %16 : vector<1x64xf32>
    %19 = arith.subf %13, %15 : vector<1x64xf32>
    %cst_9 = arith.constant 1.000000e+00 : f32
    %20 = vector.broadcast %cst_9 : f32 to vector<1x64xf32>
    %21 = arith.subf %20, %19 : vector<1x64xf32>
    %cst_10 = arith.constant 1.000000e+00 : f32
    %22 = vector.broadcast %cst_10 : f32 to vector<1x64xf32>
    %23 = arith.subf %22, %18 : vector<1x64xf32>
    %cst_11 = arith.constant 1.000000e+00 : f32
    %24 = vector.broadcast %cst_11 : f32 to vector<1x64xf32>
    %25 = arith.subf %24, %21 : vector<1x64xf32>
    %26 = arith.fptosi %14 : vector<1x64xf32> to vector<1x64xi32>
    %27 = arith.fptosi %15 : vector<1x64xf32> to vector<1x64xi32>
    %28 = tpu.iota {dimensions = array<i32: 0>} : vector<16x64xi32>
    %29 = vector.broadcast %27 : vector<1x64xi32> to vector<16x64xi32>
    %30 = arith.cmpi eq, %28, %29 : vector<16x64xi32>
    %cst_12 = arith.constant 0.000000e+00 : f32
    %31 = vector.shape_cast %21 : vector<1x64xf32> to vector<1x64xf32>
    %32 = vector.broadcast %31 : vector<1x64xf32> to vector<16x64xf32>
    %33 = vector.broadcast %cst_12 : f32 to vector<16x64xf32>
    %34 = arith.select %30, %32, %33 : vector<16x64xi1>, vector<16x64xf32>
    %c1_i32 = arith.constant 1 : i32
    %35 = vector.broadcast %c1_i32 : i32 to vector<1x64xi32>
    %36 = arith.addi %27, %35 : vector<1x64xi32>
    %37 = vector.broadcast %36 : vector<1x64xi32> to vector<16x64xi32>
    %38 = arith.cmpi eq, %28, %37 : vector<16x64xi32>
    %cst_13 = arith.constant 0.000000e+00 : f32
    %39 = vector.shape_cast %25 : vector<1x64xf32> to vector<1x64xf32>
    %40 = vector.broadcast %39 : vector<1x64xf32> to vector<16x64xf32>
    %41 = vector.broadcast %cst_13 : f32 to vector<16x64xf32>
    %42 = arith.select %38, %40, %41 : vector<16x64xi1>, vector<16x64xf32>
    %43 = arith.addf %34, %42 : vector<16x64xf32>
    %44 = tpu.iota {dimensions = array<i32: 0>} : vector<64x64xi32>
    %c4_i32 = arith.constant 4 : i32
    %45 = vector.broadcast %c4_i32 : i32 to vector<1x64xi32>
    %46 = arith.muli %26, %45 : vector<1x64xi32>
    %47 = vector.broadcast %46 : vector<1x64xi32> to vector<64x64xi32>
    %48 = arith.cmpi sge, %44, %47 : vector<64x64xi32>
    %c4_i32_14 = arith.constant 4 : i32
    %49 = vector.broadcast %c4_i32_14 : i32 to vector<1x64xi32>
    %50 = arith.addi %46, %49 : vector<1x64xi32>
    %51 = vector.broadcast %50 : vector<1x64xi32> to vector<64x64xi32>
    %52 = arith.cmpi slt, %44, %51 : vector<64x64xi32>
    %53 = arith.andi %48, %52 : vector<64x64xi1>
    %cst_15 = arith.constant 0.000000e+00 : f32
    %54 = vector.shape_cast %18 : vector<1x64xf32> to vector<1x64xf32>
    %55 = vector.broadcast %54 : vector<1x64xf32> to vector<64x64xf32>
    %56 = vector.broadcast %cst_15 : f32 to vector<64x64xf32>
    %57 = arith.select %53, %55, %56 : vector<64x64xi1>, vector<64x64xf32>
    %c4_i32_16 = arith.constant 4 : i32
    %58 = vector.broadcast %c4_i32_16 : i32 to vector<1x64xi32>
    %59 = arith.addi %46, %58 : vector<1x64xi32>
    %60 = vector.broadcast %59 : vector<1x64xi32> to vector<64x64xi32>
    %61 = arith.cmpi sge, %44, %60 : vector<64x64xi32>
    %c8_i32 = arith.constant 8 : i32
    %62 = vector.broadcast %c8_i32 : i32 to vector<1x64xi32>
    %63 = arith.addi %46, %62 : vector<1x64xi32>
    %64 = vector.broadcast %63 : vector<1x64xi32> to vector<64x64xi32>
    %65 = arith.cmpi slt, %44, %64 : vector<64x64xi32>
    %66 = arith.andi %61, %65 : vector<64x64xi1>
    %cst_17 = arith.constant 0.000000e+00 : f32
    %67 = vector.shape_cast %23 : vector<1x64xf32> to vector<1x64xf32>
    %68 = vector.broadcast %67 : vector<1x64xf32> to vector<64x64xf32>
    %69 = vector.broadcast %cst_17 : f32 to vector<64x64xf32>
    %70 = arith.select %66, %68, %69 : vector<64x64xi1>, vector<64x64xf32>
    %71 = arith.addf %57, %70 : vector<64x64xf32>
    %cst_18 = arith.constant dense<0.000000e+00> : vector<64x64xf32>
    %72 = tpu.matmul %1, %43, %cst_18 {dimension_numbers = #tpu.dot_dimension_numbers<[1], [0], [0], [1], [0, 0, 1, 1], [], []>} : vector<64x16xf32>, vector<16x64xf32>, vector<64x64xf32> -> vector<64x64xf32>
    %c0_19 = arith.constant 0 : index
    %c0_20 = arith.constant 0 : index
    %73 = vector.load %arg4[%c0_19, %c0_20] : memref<4x64xf32, #tpu.memory_space<vmem>>, vector<4x64xf32>
    %74 = arith.mulf %71, %72 : vector<64x64xf32>
    %cst_21 = arith.constant dense<0.000000e+00> : vector<4x64xf32>
    %75 = tpu.matmul %73, %74, %cst_21 {dimension_numbers = #tpu.dot_dimension_numbers<[1], [0], [0], [1], [0, 0, 1, 1], [], []>} : vector<4x64xf32>, vector<64x64xf32>, vector<4x64xf32> -> vector<4x64xf32>
    %c0_22 = arith.constant 0 : index
    %c0_23 = arith.constant 0 : index
    %c0_24 = arith.constant 0 : index
    %76 = vector.load %arg5[%c0_22, %c0_23, %c0_24] : memref<1x4x64xf32, #tpu.memory_space<vmem>>, vector<1x4x64xf32>
    %77 = vector.shape_cast %76 : vector<1x4x64xf32> to vector<4x64xf32>
    %78 = vector.shape_cast %75 : vector<4x64xf32> to vector<1x4x64xf32>
    tpu.vector_store %arg5[%c0_22, %c0_23, %c0_24], %78 {strides = array<i32>} : memref<1x4x64xf32, #tpu.memory_space<vmem>>, vector<1x4x64xf32>,
    return
  }
  func.func @transform_0(%arg0: i32, %arg1: i32) -> (i32, i32, i32) {
    %c0_i32 = arith.constant 0 : i32
    %c0_i32_0 = arith.constant 0 : i32
    %c0_i32_1 = arith.constant 0 : i32
    return %arg0, %c0_i32, %c0_i32_0 : i32, i32, i32
  }
  func.func @transform_1(%arg0: i32, %arg1: i32) -> (i32, i32, i32) {
    %c0_i32 = arith.constant 0 : i32
    %c0_i32_0 = arith.constant 0 : i32
    return %arg0, %c0_i32, %arg1 : i32, i32, i32
  }
  func.func @transform_2(%arg0: i32, %arg1: i32) -> (i32, i32) {
    %c0_i32 = arith.constant 0 : i32
    %c0_i32_0 = arith.constant 0 : i32
    %c0_i32_1 = arith.constant 0 : i32
    return %c0_i32, %c0_i32_0 : i32, i32
  }
  func.func @transform_3(%arg0: i32, %arg1: i32) -> (i32, i32, i32) {
    %c0_i32 = arith.constant 0 : i32
    %c0_i32_0 = arith.constant 0 : i32
    return %arg0, %c0_i32, %arg1 : i32, i32, i32
  }
}

</mosaic_0001>

<llo_original>
// kernel: tile.9
$region0: #{tile.9}
  %s0 = inlined_call_operand.vmem [shape: f32[4,16,4], index: 0, kind: input, shape index: {}]
  %s1 = inlined_call_operand.vmem [shape: f32[4,64], index: 1, kind: output, shape index: {}]
  $region1: #{tile.9} parent=0
    #allocation0 [shape = 'u8[4096]{0}', space=vmem, size = 0x1000, scoped, tag = 'scoped mem for output reshape']
    %s2 = smov 3
    %v3 = vld [vmem:[%s0] ss:$16 sm:%s2]
    %s4 = smov 12
    %v5 = vld [vmem:[%s0] ss:$16 sm:%s4]
    %vm6 = vcmask 1043458
    %v7 = vsel %vm6, %v5, %v3
    %vm8 = vcmask 31744
    %9 = vst.msk [vmem:[#allocation0] sm:$0xf] %vm8, %v7
    %s10 = scalar_lea.vmem %s0, 15
    %s11 = smov 3
    %v12 = vld [vmem:[%s10] ss:$16 sm:%s11]
    %s13 = scalar_lea.vmem %s0, 15
    %s14 = smov 12
    %v15 = vld [vmem:[%s13] ss:$16 sm:%s14]
    %vm16 = vcmask 1043458
    %v17 = vsel %vm16, %v15, %v12
    %18 = vrot.lane.b32.xlu0 %v17, 60
    %v19 = vpop.permute.xlu0 %18
    %vm20 = vcmask 523744
    %21 = vst.msk [vmem:[#allocation0] sm:$0xf] %vm20, %v19
    %s22 = scalar_lea.vmem %s0, 14
    %s23 = smov 3
    %v24 = vld [vmem:[%s22] ss:$16 sm:%s23]
    %s25 = scalar_lea.vmem %s0, 14
    %s26 = smov 12
    %v27 = vld [vmem:[%s25] ss:$16 sm:%s26]
    %vm28 = vcmask 1043458
    %v29 = vsel %vm28, %v27, %v24
    %30 = vrot.lane.b32.xlu0 %v29, 56
    %v31 = vpop.permute.xlu0 %30
    %vm32 = vcmask 490944
    %33 = vst.msk [vmem:[#allocation0] sm:$0xf] %vm32, %v31
    %s34 = scalar_lea.vmem %s0, 13
    %s35 = smov 3
    %v36 = vld [vmem:[%s34] ss:$16 sm:%s35]
    %s37 = scalar_lea.vmem %s0, 13
    %s38 = smov 12
    %v39 = vld [vmem:[%s37] ss:$16 sm:%s38]
    %vm40 = vcmask 1043458
    %v41 = vsel %vm40, %v39, %v36
    %42 = vrot.lane.b32.xlu0 %v41, 52
    %v43 = vpop.permute.xlu0 %42
    %vm44 = vcmask 458144
    %45 = vst.msk [vmem:[#allocation0] sm:$0xf] %vm44, %v43
    %s46 = scalar_lea.vmem %s0, 12
    %s47 = smov 3
    %v48 = vld [vmem:[%s46] ss:$16 sm:%s47]
    %s49 = scalar_lea.vmem %s0, 12
    %s50 = smov 12
    %v51 = vld [vmem:[%s49] ss:$16 sm:%s50]
    %vm52 = vcmask 1043458
    %v53 = vsel %vm52, %v51, %v48
    %54 = vrot.lane.b32.xlu0 %v53, 48
    %v55 = vpop.permute.xlu0 %54
    %vm56 = vcmask 425344
    %57 = vst.msk [vmem:[#allocation0] sm:$0xf] %vm56, %v55
    %s58 = scalar_lea.vmem %s0, 11
    %s59 = smov 3
    %v60 = vld [vmem:[%s58] ss:$16 sm:%s59]
    %s61 = scalar_lea.vmem %s0, 11
    %s62 = smov 12
    %v63 = vld [vmem:[%s61] ss:$16 sm:%s62]
    %vm64 = vcmask 1043458
    %v65 = vsel %vm64, %v63, %v60
    %66 = vrot.lane.b32.xlu0 %v65, 44
    %v67 = vpop.permute.xlu0 %66
    %vm68 = vcmask 392544
    %69 = vst.msk [vmem:[#allocation0] sm:$0xf] %vm68, %v67
    %s70 = scalar_lea.vmem %s0, 10
    %s71 = smov 3
    %v72 = vld [vmem:[%s70] ss:$16 sm:%s71]
    %s73 = scalar_lea.vmem %s0, 10
    %s74 = smov 12
    %v75 = vld [vmem:[%s73] ss:$16 sm:%s74]
    %vm76 = vcmask 1043458
    %v77 = vsel %vm76, %v75, %v72
    %78 = vrot.lane.b32.xlu0 %v77, 40
    %v79 = vpop.permute.xlu0 %78
    %vm80 = vcmask 359744
    %81 = vst.msk [vmem:[#allocation0] sm:$0xf] %vm80, %v79
    %s82 = scalar_lea.vmem %s0, 9
    %s83 = smov 3
    %v84 = vld [vmem:[%s82] ss:$16 sm:%s83]
    %s85 = scalar_lea.vmem %s0, 9
    %s86 = smov 12
    %v87 = vld [vmem:[%s85] ss:$16 sm:%s86]
    %vm88 = vcmask 1043458
    %v89 = vsel %vm88, %v87, %v84
    %90 = vrot.lane.b32.xlu0 %v89, 36
    %v91 = vpop.permute.xlu0 %90
    %vm92 = vcmask 326944
    %93 = vst.msk [vmem:[#allocation0] sm:$0xf] %vm92, %v91
    %s94 = scalar_lea.vmem %s0, 8
    %s95 = smov 3
    %v96 = vld [vmem:[%s94] ss:$16 sm:%s95]
    %s97 = scalar_lea.vmem %s0, 8
    %s98 = smov 12
    %v99 = vld [vmem:[%s97] ss:$16 sm:%s98]
    %vm100 = vcmask 1043458
    %v101 = vsel %vm100, %v99, %v96
    %102 = vrot.lane.b32.xlu0 %v101, 32
    %v103 = vpop.permute.xlu0 %102
    %vm104 = vcmask 294144
    %105 = vst.msk [vmem:[#allocation0] sm:$0xf] %vm104, %v103
    %s106 = scalar_lea.vmem %s0, 7
    %s107 = smov 3
    %v108 = vld [vmem:[%s106] ss:$16 sm:%s107]
    %s109 = scalar_lea.vmem %s0, 7
    %s110 = smov 12
    %v111 = vld [vmem:[%s109] ss:$16 sm:%s110]
    %vm112 = vcmask 1043458
    %v113 = vsel %vm112, %v111, %v108
    %114 = vrot.lane.b32.xlu0 %v113, 28
    %v115 = vpop.permute.xlu0 %114
    %vm116 = vcmask 261344
    %117 = vst.msk [vmem:[#allocation0] sm:$0xf] %vm116, %v115
    %s118 = scalar_lea.vmem %s0, 6
    %s119 = smov 3
    %v120 = vld [vmem:[%s118] ss:$16 sm:%s119]
    %s121 = scalar_lea.vmem %s0, 6
    %s122 = smov 12
    %v123 = vld [vmem:[%s121] ss:$16 sm:%s122]
    %vm124 = vcmask 1043458
    %v125 = vsel %vm124, %v123, %v120
    %126 = vrot.lane.b32.xlu0 %v125, 24
    %v127 = vpop.permute.xlu0 %126
    %vm128 = vcmask 228544
    %129 = vst.msk [vmem:[#allocation0] sm:$0xf] %vm128, %v127
    %s130 = scalar_lea.vmem %s0, 5
    %s131 = smov 3
    %v132 = vld [vmem:[%s130] ss:$16 sm:%s131]
    %s133 = scalar_lea.vmem %s0, 5
    %s134 = smov 12
    %v135 = vld [vmem:[%s133] ss:$16 sm:%s134]
    %vm136 = vcmask 1043458
    %v137 = vsel %vm136, %v135, %v132
    %138 = vrot.lane.b32.xlu0 %v137, 20
    %v139 = vpop.permute.xlu0 %138
    %vm140 = vcmask 195744
    %141 = vst.msk [vmem:[#allocation0] sm:$0xf] %vm140, %v139
    %s142 = scalar_lea.vmem %s0, 4
    %s143 = smov 3
    %v144 = vld [vmem:[%s142] ss:$16 sm:%s143]
    %s145 = scalar_lea.vmem %s0, 4
    %s146 = smov 12
    %v147 = vld [vmem:[%s145] ss:$16 sm:%s146]
    %vm148 = vcmask 1043458
    %v149 = vsel %vm148, %v147, %v144
    %150 = vrot.lane.b32.xlu0 %v149, 16
    %v151 = vpop.permute.xlu0 %150
    %vm152 = vcmask 162944
    %153 = vst.msk [vmem:[#allocation0] sm:$0xf] %vm152, %v151
    %s154 = scalar_lea.vmem %s0, 3
    %s155 = smov 3
    %v156 = vld [vmem:[%s154] ss:$16 sm:%s155]
    %s157 = scalar_lea.vmem %s0, 3
    %s158 = smov 12
    %v159 = vld [vmem:[%s157] ss:$16 sm:%s158]
    %vm160 = vcmask 1043458
    %v161 = vsel %vm160, %v159, %v156
    %162 = vrot.lane.b32.xlu0 %v161, 12
    %v163 = vpop.permute.xlu0 %162
    %vm164 = vcmask 130144
    %165 = vst.msk [vmem:[#allocation0] sm:$0xf] %vm164, %v163
    %s166 = scalar_lea.vmem %s0, 2
    %s167 = smov 3
    %v168 = vld [vmem:[%s166] ss:$16 sm:%s167]
    %s169 = scalar_lea.vmem %s0, 2
    %s170 = smov 12
    %v171 = vld [vmem:[%s169] ss:$16 sm:%s170]
    %vm172 = vcmask 1043458
    %v173 = vsel %vm172, %v171, %v168
    %174 = vrot.lane.b32.xlu0 %v173, 8
    %v175 = vpop.permute.xlu0 %174
    %vm176 = vcmask 97344
    %177 = vst.msk [vmem:[#allocation0] sm:$0xf] %vm176, %v175
    %s178 = scalar_lea.vmem %s0, 1
    %s179 = smov 3
    %v180 = vld [vmem:[%s178] ss:$16 sm:%s179]
    %s181 = scalar_lea.vmem %s0, 1
    %s182 = smov 12
    %v183 = vld [vmem:[%s181] ss:$16 sm:%s182]
    %vm184 = vcmask 1043458
    %v185 = vsel %vm184, %v183, %v180
    %186 = vrot.lane.b32.xlu0 %v185, 4
    %v187 = vpop.permute.xlu0 %186
    %vm188 = vcmask 64544
    %189 = vst.msk [vmem:[#allocation0] sm:$0xf] %vm188, %v187
    %s191 = sshllo.u32 0, 4
    %v193 = vld [vmem:[#allocation0] sm:%s191]
    %s194 = sshllo.u32 0, 4
    %195 = vst [vmem:[%s1] sm:%s194] %v193

// kernel: grid_sampler.1
$region0: #{grid_sampler.1}
  #allocation0 [shape = 'u32[]', space=smem, size = 0x4, offset = 0x4, fixed_abs, tag = 'smem constant byte address 0x4 - core index']
  #allocation1 [shape = 'u32[144,128]{1,0:T(1,128)}', space=vmem, size = 0x12000, scoped, tag = 'internal scratch']
  %s0 = inlined_call_operand.vmem [shape: f32[2,64,16], index: 0, kind: input, shape index: {}]
  %s1 = inlined_call_operand.vmem [shape: f32[2,2,64], index: 1, kind: input, shape index: {}]
  %s2 = inlined_call_operand.vmem [shape: f32[4,64], index: 2, kind: input, shape index: {}]
  %s3 = inlined_call_operand.vmem [shape: f32[2,4,64], index: 3, kind: output, shape index: {}]
  %s4 = sld [smem:[#allocation0]]
  $region45: #{grid_sampler.1} parent=0
    _
  %s6 = ssub.s32 1, %s4
  %s7 = scalar_select 0, %s6, %s4
  loop: start=0, step=1, limit=4
  $region2: #{grid_sampler.1} parent=0 // loop_pre_header
    _
  $region3: #{grid_sampler.1} parent=0 // loop_header
    %s9 = sphi 0, %s13
    %p10 = scmp.ge.s32.totalorder %s9, 4
    %s16 = sphi 0, %s28
    %s17 = sphi 0, %s24
    %s18 = sphi 0, %s16
    %s19 = sphi 0, %s17
    %s20 = sphi 0, %s18
    %s21 = sphi 0, %s19
    %s31 = sphi 0, %s33
    %s34 = sphi 0, %s31
    %s35 = sphi 0, %s34
    %s51 = sphi 0, %s35
    %s59 = sphi 0, %s61
    %s62 = sphi 0, %s59
    %s63 = sphi 0, %s62
    %s79 = sphi 0, %s63
    %s83 = sphi 0, %s83
    %s85 = sphi 0, %s83
    %s86 = sphi 0, %s85
    %s100 = sphi 0, %s86
    %s108 = sphi 0, %s110
    %s111 = sphi 0, %s108
    %s112 = sphi 0, %s111
    %s128 = sphi 0, %s112
  $region4: #{grid_sampler.1} parent=0 // loop_header_branch
    %12 = sbr.rel (%p10) target = $region8
  $region5: #{grid_sampler.1} parent=0 // loop_body
    %s14 = ssub.s32 %s9, 1
    %s15 = ssub.s32 %s9, 2
    %s22 = sadd.s32 1, %s17
    %p23 = scmp.ge.s32.totalorder %s22, 1
    %s24 = scalar_select %p23, 0, %s22
    %s25 = sadd.s32 1, %s16
    %s26 = scalar_select %p23, %s25, %s16
    %p27 = scmp.ge.s32.totalorder %s26, 2
    %s28 = scalar_select %p27, 0, %s26
    %s29 = ssub.s32 %s16, %s28
    %p30 = scmp.eq.s32.totalorder %s29, 0
    %s32 = sadd.s32 %s31, 1
    %s33 = scalar_select %p30, %s31, %s32
    %p36 = pneg %p30
    %p37 = scmp.eq.s32.totalorder %s9, 1
    %p38 = por %p36, %p37
    %p39 = scmp.ne.s32.totalorder %s31, %s34
    %p40 = scmp.eq.s32.totalorder %s9, 0
    %p41 = por %p39, %p40
    %p42 = scmp.ne.s32.totalorder %s31, %s34
    %p43 = scmp.eq.s32.totalorder %s14, 1
    %p44 = por %p42, %p43
    %p45 = scmp.ne.s32.totalorder %s34, %s35
    %p46 = scmp.eq.s32.totalorder %s14, 0
    %p47 = por %p45, %p46
    %p48 = scmp.ne.s32.totalorder %s34, %s35
    %p49 = scmp.eq.s32.totalorder %s15, 1
    %p50 = por %p48, %p49
    %p52 = scmp.ne.s32.totalorder %s35, %s51
    %p53 = scmp.eq.s32.totalorder %s15, 0
    %p54 = por %p52, %p53
    %s55 = ssub.s32 %s16, %s28
    %s56 = ssub.s32 %s17, %s24
    %s57 = sor.u32 %s55, %s56
    %p58 = scmp.eq.s32.totalorder %s57, 0
    %s60 = sadd.s32 %s59, 1
    %s61 = scalar_select %p58, %s59, %s60
    %p64 = pneg %p58
    %p65 = scmp.eq.s32.totalorder %s9, 1
    %p66 = por %p64, %p65
    %p67 = scmp.ne.s32.totalorder %s59, %s62
    %p68 = scmp.eq.s32.totalorder %s9, 0
    %p69 = por %p67, %p68
    %p70 = scmp.ne.s32.totalorder %s59, %s62
    %p71 = scmp.eq.s32.totalorder %s14, 1
    %p72 = por %p70, %p71
    %p73 = scmp.ne.s32.totalorder %s62, %s63
    %p74 = scmp.eq.s32.totalorder %s14, 0
    %p75 = por %p73, %p74
    %p76 = scmp.ne.s32.totalorder %s62, %s63
    %p77 = scmp.eq.s32.totalorder %s15, 1
    %p78 = por %p76, %p77
    %p80 = scmp.ne.s32.totalorder %s63, %s79
    %p81 = scmp.eq.s32.totalorder %s15, 0
    %p82 = por %p80, %p81
    %s84 = sadd.s32 %s83, 1
    %p87 = scmp.eq.s32.totalorder %s9, 1
    %p88 = scmp.ne.s32.totalorder %s83, %s85
    %p89 = scmp.eq.s32.totalorder %s9, 0
    %p90 = por %p88, %p89
    %p91 = scmp.ne.s32.totalorder %s83, %s85
    %p92 = scmp.eq.s32.totalorder %s14, 1
    %p93 = por %p91, %p92
    %p94 = scmp.ne.s32.totalorder %s85, %s86
    %p95 = scmp.eq.s32.totalorder %s14, 0
    %p96 = por %p94, %p95
    %p97 = scmp.ne.s32.totalorder %s85, %s86
    %p98 = scmp.eq.s32.totalorder %s15, 1
    %p99 = por %p97, %p98
    %p101 = scmp.ne.s32.totalorder %s86, %s100
    %p102 = scmp.eq.s32.totalorder %s15, 0
    %p103 = por %p101, %p102
    %s104 = ssub.s32 %s16, %s28
    %s105 = ssub.s32 %s17, %s24
    %s106 = sor.u32 %s104, %s105
    %p107 = scmp.eq.s32.totalorder %s106, 0
    %s109 = sadd.s32 %s108, 1
    %s110 = scalar_select %p107, %s108, %s109
    %p113 = pneg %p107
    %p114 = scmp.eq.s32.totalorder %s9, 1
    %p115 = por %p113, %p114
    %p116 = scmp.ne.s32.totalorder %s108, %s111
    %p117 = scmp.eq.s32.totalorder %s9, 0
    %p118 = por %p116, %p117
    %p119 = scmp.ne.s32.totalorder %s108, %s111
    %p120 = scmp.eq.s32.totalorder %s14, 1
    %p121 = por %p119, %p120
    %p122 = scmp.ne.s32.totalorder %s111, %s112
    %p123 = scmp.eq.s32.totalorder %s14, 0
    %p124 = por %p122, %p123
    %p125 = scmp.ne.s32.totalorder %s111, %s112
    %p126 = scmp.eq.s32.totalorder %s15, 1
    %p127 = por %p125, %p126
    %p129 = scmp.ne.s32.totalorder %s112, %s128
    %p130 = scmp.eq.s32.totalorder %s15, 0
    %p131 = por %p129, %p130
    %p132 = scmp.le.s32.totalorder 1, %s9
    %p133 = scmp.lt.s32.totalorder %s9, 3
    %p134 = pnand %p132, %p133
    %p135 = pneg %p134
    // Predicated region
    $region9: #{grid_sampler.1} parent=5 // pred_check
      _
    $region10: #{grid_sampler.1} parent=5 // pred_check_branch
      %137 = sbr.rel (%p134) target = $region12
    $region11: #{grid_sampler.1} parent=5 // pred_region
      %s138 = ssub.s32 %s9, 1
      // Predicated region
      $region13: #{grid_sampler.1} parent=11 // pred_check
        %p139 = pneg %p96
      $region14: #{grid_sampler.1} parent=11 // pred_check_branch
        %141 = sbr.rel (%p139) target = $region16
      $region15: #{grid_sampler.1} parent=11 // pred_region
        _
      $region16: #{grid_sampler.1} parent=11 // pred_fallthru
        _
    $region12: #{grid_sampler.1} parent=5 // pred_fallthru
      _
    %p142 = scmp.lt.s32.totalorder %s9, 2
    // Predicated region
    $region17: #{grid_sampler.1} parent=5 // pred_check
      %p143 = pneg %p142
    $region18: #{grid_sampler.1} parent=5 // pred_check_branch
      %145 = sbr.rel (%p143) target = $region20
    $region19: #{grid_sampler.1} parent=5 // pred_region
      // Predicated region
      $region21: #{grid_sampler.1} parent=19 // pred_check
        %p146 = pneg %p41
      $region22: #{grid_sampler.1} parent=19 // pred_check_branch
        %148 = sbr.rel (%p146) target = $region24
      $region23: #{grid_sampler.1} parent=19 // pred_region
        %p149 = scmp.lt.s32.totalorder %s16, 1
        %s150 = scalar_select %p149, %s16, 1
        %s151 = smul.addr %s150, 8
        %s152 = smul.addr %s151, 8
        %s153 = scalar_lea.vmem %s0, %s152
      $region24: #{grid_sampler.1} parent=19 // pred_fallthru
        _
      // Predicated region
      $region25: #{grid_sampler.1} parent=19 // pred_check
        %p154 = pneg %p69
      $region26: #{grid_sampler.1} parent=19 // pred_check_branch
        %156 = sbr.rel (%p154) target = $region28
      $region27: #{grid_sampler.1} parent=19 // pred_region
        %p157 = scmp.lt.s32.totalorder %s16, 1
        %s158 = scalar_select %p157, %s16, 1
        %p159 = scmp.lt.s32.totalorder %s17, 0
        %s160 = scalar_select %p159, %s17, 0
        %s161 = sadd.s32 %s160, %s158
        %s162 = smul.addr %s161, 2
        %s163 = scalar_lea.vmem %s1, %s162
      $region28: #{grid_sampler.1} parent=19 // pred_fallthru
        _
    $region20: #{grid_sampler.1} parent=5 // pred_fallthru
      _
    %p164 = scmp.le.s32.totalorder 1, %s9
    %p165 = scmp.lt.s32.totalorder %s9, 3
    %p166 = pnand %p164, %p165
    %p167 = pneg %p166
    // Predicated region
    $region29: #{grid_sampler.1} parent=5 // pred_check
      _
    $region30: #{grid_sampler.1} parent=5 // pred_check_branch
      %169 = sbr.rel (%p166) target = $region32
    $region31: #{grid_sampler.1} parent=5 // pred_region
      %s170 = ssub.s32 %s9, 1
      %p171 = scmp.lt.s32.totalorder %s18, 1
      %s172 = scalar_select %p171, %s18, 1
      %s173 = smul.addr %s172, 8
      %s174 = smul.addr %s173, 8
      %s175 = scalar_lea.vmem %s0, %s174
      %p176 = pneg %p47
      %p177 = pneg %p44
      %p178 = scmp.lt.s32.totalorder %s18, 1
      %s179 = scalar_select %p178, %s18, 1
      %p180 = scmp.lt.s32.totalorder %s19, 0
      %s181 = scalar_select %p180, %s19, 0
      %s182 = sadd.s32 %s181, %s179
      %s183 = smul.addr %s182, 2
      %s184 = scalar_lea.vmem %s1, %s183
      %p185 = pneg %p75
      %p186 = pneg %p72
      %p187 = pneg %p96
      %p188 = pneg %p93
      %p189 = pneg %p124
      %p190 = pneg %p121
      %p191 = scmp.lt.s32.totalorder %s18, 1
      %s192 = scalar_select %p191, %s18, 1
      %p193 = scmp.lt.s32.totalorder %s19, 0
      %s194 = scalar_select %p193, %s19, 0
      %s195 = sadd.s32 %s194, %s192
      %s196 = smul.addr %s195, 4
      %s197 = scalar_lea.vmem %s3, %s196
      %p198 = scmp.lt.s32.totalorder %s18, 1
      %s199 = scalar_select %p198, %s18, 1
      %s200 = smul.addr %s199, 8
      %s201 = smul.addr %s200, 8
      %s202 = scalar_lea.vmem %s0, %s201
      %p203 = scmp.lt.s32.totalorder %s18, 1
      %s204 = scalar_select %p203, %s18, 1
      %p205 = scmp.lt.s32.totalorder %s19, 0
      %s206 = scalar_select %p205, %s19, 0
      %s207 = sadd.s32 %s206, %s204
      %s208 = smul.addr %s207, 2
      %s209 = scalar_lea.vmem %s1, %s208
      %p210 = scmp.lt.s32.totalorder %s18, 1
      %s211 = scalar_select %p210, %s18, 1
      %p212 = scmp.lt.s32.totalorder %s19, 0
      %s213 = scalar_select %p212, %s19, 0
      %s214 = sadd.s32 %s213, %s211
      %s215 = smul.addr %s214, 4
      %s216 = scalar_lea.vmem %s3, %s215
      %v217 = vld [vmem:[%s202] sm:$0xff]
      %v218 = vld [vmem:[%s202 + $0x8] sm:$0xff]
      %v219 = vld [vmem:[%s202 + $0x10] sm:$0xff]
      %v220 = vld [vmem:[%s202 + $0x18] sm:$0xff]
      %v221 = vld [vmem:[%s202 + $0x20] sm:$0xff]
      %v222 = vld [vmem:[%s202 + $0x28] sm:$0xff]
      %v223 = vld [vmem:[%s202 + $0x30] sm:$0xff]
      %v224 = vld [vmem:[%s202 + $0x38] sm:$0xff]
      %v225 = vld [vmem:[%s209] sm:$0x3]
      %v226 = vadd.f32 %v225, 1.0
      %v227 = vmul.f32 %v226, 7.5
      %v228 = vfloor.f32 %v227
      %v229 = vsub.f32 %v227, %v228
      %v230 = vsub.f32 1.0, %v229
      %v231 = vsub.f32 1.0, %v230
      %v232 = vcvt.f32.s32.to.zero.pseudo %v228
      %v233 = vlaneseq
      %v234 = vshrl.u32 %v233, 7
      %v235 = vadd.s32 %v234, 8
      %v236 = vlaneseq
      %v237 = vshrl.u32 %v236, 7
      %v238 = vsub.s32 0, %v237
      %v239 = vrot.slane %v232, %v238
      %vm240 = vcmp.eq.s32.totalorder %v234, %v239
      %vm241 = vcmp.eq.s32.totalorder %v235, %v239
      %v242 = vlaneseq
      %v243 = vshrl.u32 %v242, 7
      %v244 = vsub.s32 0, %v243
      %v245 = vrot.slane %v230, %v244
      %v246 = vsel %vm240, %v245, 0.0
      %v247 = vsel %vm241, %v245, 0.0
      %v248 = vadd.s32 %v232, 1
      %v249 = vlaneseq
      %v250 = vshrl.u32 %v249, 7
      %v251 = vsub.s32 0, %v250
      %v252 = vrot.slane %v248, %v251
      %vm253 = vcmp.eq.s32.totalorder %v234, %v252
      %vm254 = vcmp.eq.s32.totalorder %v235, %v252
      %v255 = vlaneseq
      %v256 = vshrl.u32 %v255, 7
      %v257 = vsub.s32 0, %v256
      %v258 = vrot.slane %v231, %v257
      %v259 = vsel %vm253, %v258, 0.0
      %v260 = vsel %vm254, %v258, 0.0
      %v261 = vadd.f32 %v246, %v259
      %v262 = vadd.f32 %v247, %v260
      %v263 = vadd.s32 %v234, 16
      %v264 = vadd.s32 %v234, 24
      %v265 = vadd.s32 %v234, 32
      %v266 = vadd.s32 %v234, 40
      %v267 = vadd.s32 %v234, 48
      %v268 = vadd.s32 %v234, 56
      %v269 = vmul.u32 %v232, 4
      %v270 = vlaneseq
      %v271 = vshrl.u32 %v270, 7
      %v272 = vsub.s32 1, %v271
      %v273 = vrot.slane %v269, %v272
      %vm274 = vcmp.ge.s32.totalorder %v234, %v273
      %vm275 = vcmp.ge.s32.totalorder %v235, %v273
      %vm276 = vcmp.ge.s32.totalorder %v263, %v273
      %vm277 = vcmp.ge.s32.totalorder %v264, %v273
      %vm278 = vcmp.ge.s32.totalorder %v265, %v273
      %vm279 = vcmp.ge.s32.totalorder %v266, %v273
      %vm280 = vcmp.ge.s32.totalorder %v267, %v273
      %vm281 = vcmp.ge.s32.totalorder %v268, %v273
      %v282 = vadd.s32 %v269, 4
      %v283 = vlaneseq
      %v284 = vshrl.u32 %v283, 7
      %v285 = vsub.s32 1, %v284
      %v286 = vrot.slane %v282, %v285
      %vm287 = vcmp.lt.s32.totalorder %v234, %v286
      %vm288 = vcmp.lt.s32.totalorder %v235, %v286
      %vm289 = vcmp.lt.s32.totalorder %v263, %v286
      %vm290 = vcmp.lt.s32.totalorder %v264, %v286
      %vm291 = vcmp.lt.s32.totalorder %v265, %v286
      %vm292 = vcmp.lt.s32.totalorder %v266, %v286
      %vm293 = vcmp.lt.s32.totalorder %v267, %v286
      %vm294 = vcmp.lt.s32.totalorder %v268, %v286
      %vm295 = vmand %vm274, %vm287
      %vm296 = vmand %vm275, %vm288
      %vm297 = vmand %vm276, %vm289
      %vm298 = vmand %vm277, %vm290
      %vm299 = vmand %vm278, %vm291
      %vm300 = vmand %vm279, %vm292
      %vm301 = vmand %vm280, %vm293
      %vm302 = vmand %vm281, %vm294
      %v303 = vlaneseq
      %v304 = vshrl.u32 %v303, 7
      %v305 = vsub.s32 1, %v304
      %v306 = vrot.slane %v230, %v305
      %v307 = vsel %vm295, %v306, 0.0
      %v308 = vsel %vm296, %v306, 0.0
      %v309 = vsel %vm297, %v306, 0.0
      %v310 = vsel %vm298, %v306, 0.0
      %v311 = vsel %vm299, %v306, 0.0
      %v312 = vsel %vm300, %v306, 0.0
      %v313 = vsel %vm301, %v306, 0.0
      %v314 = vsel %vm302, %v306, 0.0
      %vm315 = vcmp.ge.s32.totalorder %v234, %v286
      %vm316 = vcmp.ge.s32.totalorder %v235, %v286
      %vm317 = vcmp.ge.s32.totalorder %v263, %v286
      %vm318 = vcmp.ge.s32.totalorder %v264, %v286
      %vm319 = vcmp.ge.s32.totalorder %v265, %v286
      %vm320 = vcmp.ge.s32.totalorder %v266, %v286
      %vm321 = vcmp.ge.s32.totalorder %v267, %v286
      %vm322 = vcmp.ge.s32.totalorder %v268, %v286
      %v323 = vadd.s32 %v269, 8
      %v324 = vlaneseq
      %v325 = vshrl.u32 %v324, 7
      %v326 = vsub.s32 1, %v325
      %v327 = vrot.slane %v323, %v326
      %vm328 = vcmp.lt.s32.totalorder %v234, %v327
      %vm329 = vcmp.lt.s32.totalorder %v235, %v327
      %vm330 = vcmp.lt.s32.totalorder %v263, %v327
      %vm331 = vcmp.lt.s32.totalorder %v264, %v327
      %vm332 = vcmp.lt.s32.totalorder %v265, %v327
      %vm333 = vcmp.lt.s32.totalorder %v266, %v327
      %vm334 = vcmp.lt.s32.totalorder %v267, %v327
      %vm335 = vcmp.lt.s32.totalorder %v268, %v327
      %vm336 = vmand %vm315, %vm328
      %vm337 = vmand %vm316, %vm329
      %vm338 = vmand %vm317, %vm330
      %vm339 = vmand %vm318, %vm331
      %vm340 = vmand %vm319, %vm332
      %vm341 = vmand %vm320, %vm333
      %vm342 = vmand %vm321, %vm334
      %vm343 = vmand %vm322, %vm335
      %v344 = vlaneseq
      %v345 = vshrl.u32 %v344, 7
      %v346 = vsub.s32 1, %v345
      %v347 = vrot.slane %v231, %v346
      %v348 = vsel %vm336, %v347, 0.0
      %v349 = vsel %vm337, %v347, 0.0
      %v350 = vsel %vm338, %v347, 0.0
      %v351 = vsel %vm339, %v347, 0.0
      %v352 = vsel %vm340, %v347, 0.0
      %v353 = vsel %vm341, %v347, 0.0
      %v354 = vsel %vm342, %v347, 0.0
      %v355 = vsel %vm343, %v347, 0.0
      %v356 = vadd.f32 %v307, %v348
      %v357 = vadd.f32 %v308, %v349
      %v358 = vadd.f32 %v309, %v350
      %v359 = vadd.f32 %v310, %v351
      %v360 = vadd.f32 %v311, %v352
      %v361 = vadd.f32 %v312, %v353
      %v362 = vadd.f32 %v313, %v354
      %v363 = vadd.f32 %v314, %v355
      %vm364 = vcmask 130048
      %v366 = vsel %vm364, %v217, 0
      %v369 = vsel %vm364, %v218, 0
      %v372 = vsel %vm364, %v219, 0
      %v375 = vsel %vm364, %v220, 0
      %v378 = vsel %vm364, %v221, 0
      %v381 = vsel %vm364, %v222, 0
      %v384 = vsel %vm364, %v223, 0
      %v387 = vsel %vm364, %v224, 0
      %389 = vmatprep.subr.mxu0 0.0
      %390 = vmatpush1.msra.mxu0 %v261
      %391 = vmatprep.subr.mxu0 0.0
      %392 = vmatpush1.msra.mxu0 %v262
      %393 = vmatprep.subr.mxu0 0.0
      %394 = vmatpush1.msra.mxu0 0.0
      %395 = vmatprep.subr.mxu0 0.0
      %396 = vmatpush1.msra.mxu0 0.0
      %397 = vmatprep.subr.mxu0 0.0
      %398 = vmatpush1.msra.mxu0 0.0
      %399 = vmatprep.subr.mxu0 0.0
      %400 = vmatpush1.msra.mxu0 0.0
      %401 = vmatprep.subr.mxu0 0.0
      %402 = vmatpush1.msra.mxu0 0.0
      %403 = vmatprep.subr.mxu0 0.0
      %404 = vmatpush1.msra.mxu0 0.0
      %405 = vmatprep.subr.mxu0 0.0
      %406 = vmatpush1.msra.mxu0 0.0
      %407 = vmatprep.subr.mxu0 0.0
      %408 = vmatpush1.msra.mxu0 0.0
      %409 = vmatprep.subr.mxu0 0.0
      %410 = vmatpush1.msra.mxu0 0.0
      %411 = vmatprep.subr.mxu0 0.0
      %412 = vmatpush1.msra.mxu0 0.0
      %413 = vmatprep.subr.mxu0 0.0
      %414 = vmatpush1.msra.mxu0 0.0
      %415 = vmatprep.subr.mxu0 0.0
      %416 = vmatpush1.msra.mxu0 0.0
      %417 = vmatprep.subr.mxu0 0.0
      %418 = vmatpush1.msra.mxu0 0.0
      %419 = vmatprep.subr.mxu0 0.0
      %420 = vmatpush1.msra.mxu0 0.0
      %421 = vmatprep.subr.mxu0 0.0
      %422 = vmatpush1.msra.mxu0 0.0
      %423 = vmatprep.subr.mxu0 0.0
      %424 = vmatpush1.msra.mxu0 0.0
      %425 = vmatprep.subr.mxu0 0.0
      %426 = vmatpush1.msra.mxu0 0.0
      %427 = vmatprep.subr.mxu0 0.0
      %428 = vmatpush1.msra.mxu0 0.0
      %429 = vmatprep.subr.mxu0 0.0
      %430 = vmatpush1.msra.mxu0 0.0
      %431 = vmatprep.subr.mxu0 0.0
      %432 = vmatpush1.msra.mxu0 0.0
      %433 = vmatprep.subr.mxu0 0.0
      %434 = vmatpush1.msra.mxu0 0.0
      %435 = vmatprep.subr.mxu0 0.0
      %436 = vmatpush1.msra.mxu0 0.0
      %437 = vmatprep.subr.mxu0 0.0
      %438 = vmatpush1.msra.mxu0 0.0
      %439 = vmatprep.subr.mxu0 0.0
      %440 = vmatpush1.msra.mxu0 0.0
      %441 = vmatprep.subr.mxu0 0.0
      %442 = vmatpush1.msra.mxu0 0.0
      %443 = vmatprep.subr.mxu0 0.0
      %444 = vmatpush1.msra.mxu0 0.0
      %445 = vmatprep.subr.mxu0 0.0
      %446 = vmatpush1.msra.mxu0 0.0
      %447 = vmatprep.subr.mxu0 0.0
      %448 = vmatpush1.msra.mxu0 0.0
      %449 = vmatprep.subr.mxu0 0.0
      %450 = vmatpush1.msra.mxu0 0.0
      %451 = vmatprep.subr.mxu0 0.0
      %452 = vmatpush1.msra.mxu0 0.0
      %453 = vmatprep.mubr.f32.mxu0 0.0
      %454 = vmatmul.mubr.f32.gmra.mrb[0].mxu0 %v366
      %v455 = vpop.f32.mrb[0].mxu0
      %v456 = vadd.f32 0.0, %v455
      %v457 = vpop.f32.mrb[0].mxu0
      %458 = vmatprep.mubr.f32.mxu0 0.0
      %459 = vmatmul.mubr.f32.gmra.mrb[0].mxu0 %v369
      %v460 = vpop.f32.mrb[0].mxu0
      %v461 = vadd.f32 0.0, %v460
      %v462 = vpop.f32.mrb[0].mxu0
      %463 = vmatprep.mubr.f32.mxu0 0.0
      %464 = vmatmul.mubr.f32.gmra.mrb[0].mxu0 %v372
      %v465 = vpop.f32.mrb[0].mxu0
      %v466 = vadd.f32 0.0, %v465
      %v467 = vpop.f32.mrb[0].mxu0
      %468 = vmatprep.mubr.f32.mxu0 0.0
      %469 = vmatmul.mubr.f32.gmra.mrb[0].mxu0 %v375
      %v470 = vpop.f32.mrb[0].mxu0
      %v471 = vadd.f32 0.0, %v470
      %v472 = vpop.f32.mrb[0].mxu0
      %473 = vmatprep.mubr.f32.mxu0 0.0
      %474 = vmatmul.mubr.f32.gmra.mrb[0].mxu0 %v378
      %v475 = vpop.f32.mrb[0].mxu0
      %v476 = vadd.f32 0.0, %v475
      %v477 = vpop.f32.mrb[0].mxu0
      %478 = vmatprep.mubr.f32.mxu0 0.0
      %479 = vmatmul.mubr.f32.gmra.mrb[0].mxu0 %v381
      %v480 = vpop.f32.mrb[0].mxu0
      %v481 = vadd.f32 0.0, %v480
      %v482 = vpop.f32.mrb[0].mxu0
      %483 = vmatprep.mubr.f32.mxu0 0.0
      %484 = vmatmul.mubr.f32.gmra.mrb[0].mxu0 %v384
      %v485 = vpop.f32.mrb[0].mxu0
      %v486 = vadd.f32 0.0, %v485
      %v487 = vpop.f32.mrb[0].mxu0
      %488 = vmatprep.mubr.f32.mxu0 0.0
      %489 = vmatmul.mubr.f32.gmra.mrb[0].mxu0 %v387
      %v490 = vpop.f32.mrb[0].mxu0
      %v491 = vadd.f32 0.0, %v490
      %v492 = vpop.f32.mrb[0].mxu0
      %493 = vdwg.mxu0
      %v494 = vld [vmem:[%s2] sm:$0xf]
      %v495 = vmul.f32 %v356, %v456
      %v496 = vmul.f32 %v357, %v461
      %v497 = vmul.f32 %v358, %v466
      %v498 = vmul.f32 %v359, %v471
      %v499 = vmul.f32 %v360, %v476
      %v500 = vmul.f32 %v361, %v481
      %v501 = vmul.f32 %v362, %v486
      %v502 = vmul.f32 %v363, %v491
      %vm503 = vcmask 523264
      %v505 = vsel %vm503, %v494, 0
      %507 = vmatprep.subr.mxu0 0.0
      %508 = vmatpush1.msra.mxu0 %v495
      %509 = vmatprep.subr.mxu0 0.0
      %510 = vmatpush1.msra.mxu0 %v496
      %511 = vmatprep.subr.mxu0 0.0
      %512 = vmatpush1.msra.mxu0 %v497
      %513 = vmatprep.subr.mxu0 0.0
      %514 = vmatpush1.msra.mxu0 %v498
      %515 = vmatprep.subr.mxu0 0.0
      %516 = vmatpush1.msra.mxu0 %v499
      %517 = vmatprep.subr.mxu0 0.0
      %518 = vmatpush1.msra.mxu0 %v500
      %519 = vmatprep.subr.mxu0 0.0
      %520 = vmatpush1.msra.mxu0 %v501
      %521 = vmatprep.subr.mxu0 0.0
      %522 = vmatpush1.msra.mxu0 %v502
      %523 = vmatprep.subr.mxu0 0.0
      %524 = vmatpush1.msra.mxu0 0.0
      %525 = vmatprep.subr.mxu0 0.0
      %526 = vmatpush1.msra.mxu0 0.0
      %527 = vmatprep.subr.mxu0 0.0
      %528 = vmatpush1.msra.mxu0 0.0
      %529 = vmatprep.subr.mxu0 0.0
      %530 = vmatpush1.msra.mxu0 0.0
      %531 = vmatprep.subr.mxu0 0.0
      %532 = vmatpush1.msra.mxu0 0.0
      %533 = vmatprep.subr.mxu0 0.0
      %534 = vmatpush1.msra.mxu0 0.0
      %535 = vmatprep.subr.mxu0 0.0
      %536 = vmatpush1.msra.mxu0 0.0
      %537 = vmatprep.subr.mxu0 0.0
      %538 = vmatpush1.msra.mxu0 0.0
      %539 = vmatprep.subr.mxu0 0.0
      %540 = vmatpush1.msra.mxu0 0.0
      %541 = vmatprep.subr.mxu0 0.0
      %542 = vmatpush1.msra.mxu0 0.0
      %543 = vmatprep.subr.mxu0 0.0
      %544 = vmatpush1.msra.mxu0 0.0
      %545 = vmatprep.subr.mxu0 0.0
      %546 = vmatpush1.msra.mxu0 0.0
      %547 = vmatprep.subr.mxu0 0.0
      %548 = vmatpush1.msra.mxu0 0.0
      %549 = vmatprep.subr.mxu0 0.0
      %550 = vmatpush1.msra.mxu0 0.0
      %551 = vmatprep.subr.mxu0 0.0
      %552 = vmatpush1.msra.mxu0 0.0
      %553 = vmatprep.subr.mxu0 0.0
      %554 = vmatpush1.msra.mxu0 0.0
      %555 = vmatprep.subr.mxu0 0.0
      %556 = vmatpush1.msra.mxu0 0.0
      %557 = vmatprep.subr.mxu0 0.0
      %558 = vmatpush1.msra.mxu0 0.0
      %559 = vmatprep.subr.mxu0 0.0
      %560 = vmatpush1.msra.mxu0 0.0
      %561 = vmatprep.subr.mxu0 0.0
      %562 = vmatpush1.msra.mxu0 0.0
      %563 = vmatprep.subr.mxu0 0.0
      %564 = vmatpush1.msra.mxu0 0.0
      %565 = vmatprep.subr.mxu0 0.0
      %566 = vmatpush1.msra.mxu0 0.0
      %567 = vmatprep.subr.mxu0 0.0
      %568 = vmatpush1.msra.mxu0 0.0
      %569 = vmatprep.subr.mxu0 0.0
      %570 = vmatpush1.msra.mxu0 0.0
      %571 = vmatprep.mubr.f32.mxu0 0.0
      %572 = vmatmul.mubr.f32.gmra.mrb[0].mxu0 %v505
      %v573 = vpop.f32.mrb[0].mxu0
      %v574 = vadd.f32 0.0, %v573
      %v575 = vpop.f32.mrb[0].mxu0
      %576 = vdwg.mxu0
      %vm577 = vcmask 519168
      %578 = vst.msk [vmem:[%s216] sm:$0xf] %vm577, %v574
      %p579 = scmp.lt.s32.totalorder %s18, 1
      %s580 = scalar_select %p579, %s18, 1
      %p581 = scmp.lt.s32.totalorder %s19, 0
      %s582 = scalar_select %p581, %s19, 0
      %s583 = sadd.s32 %s582, %s580
      %s584 = smul.addr %s583, 4
      %s585 = scalar_lea.vmem %s3, %s584
      // Predicated region
      $region33: #{grid_sampler.1} parent=31 // pred_check
        %p586 = pneg %p121
      $region34: #{grid_sampler.1} parent=31 // pred_check_branch
        %588 = sbr.rel (%p586) target = $region36
      $region35: #{grid_sampler.1} parent=31 // pred_region
        _
      $region36: #{grid_sampler.1} parent=31 // pred_fallthru
        _
    $region32: #{grid_sampler.1} parent=5 // pred_fallthru
      _
    %p589 = scmp.le.s32.totalorder 2, %s9
    // Predicated region
    $region37: #{grid_sampler.1} parent=5 // pred_check
      %p590 = pneg %p589
    $region38: #{grid_sampler.1} parent=5 // pred_check_branch
      %592 = sbr.rel (%p590) target = $region40
    $region39: #{grid_sampler.1} parent=5 // pred_region
      %s593 = ssub.s32 %s9, 2
      // Predicated region
      $region41: #{grid_sampler.1} parent=39 // pred_check
        %p594 = pneg %p127
      $region42: #{grid_sampler.1} parent=39 // pred_check_branch
        %596 = sbr.rel (%p594) target = $region44
      $region43: #{grid_sampler.1} parent=39 // pred_region
        %p597 = scmp.lt.s32.totalorder %s20, 1
        %s598 = scalar_select %p597, %s20, 1
        %p599 = scmp.lt.s32.totalorder %s21, 0
        %s600 = scalar_select %p599, %s21, 0
        %s601 = sadd.s32 %s600, %s598
        %s602 = smul.addr %s601, 4
        %s603 = scalar_lea.vmem %s3, %s602
      $region44: #{grid_sampler.1} parent=39 // pred_fallthru
        _
    $region40: #{grid_sampler.1} parent=5 // pred_fallthru
      _
  $region6: #{grid_sampler.1} parent=0 // loop_footer
    %s13 = sadd.s32 1, %s9
  $region7: #{grid_sampler.1} parent=0 // loop_footer_branch
    %8 = sbr.rel target = $region3
  $region8: #{grid_sampler.1} parent=0 // loop_exit
    _

</llo_original>
